<compile_context>
chip_gen: v7x
topology: tpu7x:2x2x1
jax: 0.10.0
libtpu: 0.0.40
codegen_flags: <defaults>
</compile_context>

<pallas_src>
import jax
import jax.numpy as jnp
from jax.experimental import pallas as pl
from jax.experimental.pallas import tpu as pltpu


def _kernel(wl_ref, wg_ref, b_ref, x_ref, g_ref, o_ref):
    # x_ref: (bn, c_local, W) native dtype    local features (H=1 squeezed)
    # g_ref: (bn, c_global)   native dtype    global features
    # wl_ref: (1, c_local, 1) f32 VMEM, wg_ref: (1, c_global) f32 VMEM, b_ref: (1,) f32 SMEM
    # o_ref: (bn, W) f32      flattened module output for this batch tile
    x = x_ref[...].astype(jnp.float32)
    # 1x1 conv over the local channels: whole-tile multiply (VPU) + cross-sublane
    # reduce (XLU slot, otherwise idle) -- no strided per-channel slices.
    acc = jnp.sum(x * wl_ref[...], axis=1)                                # (bn, W)

    # 1x1 conv over the globally-broadcast channels collapses to a per-sample
    # scalar (the repeat along W is never materialized); conv bias folded in.
    g = g_ref[...].astype(jnp.float32)
    goff = jnp.sum(g * wg_ref[...], axis=-1, keepdims=True) + b_ref[0]    # (bn, 1)

    o_ref[...] = acc + goff


def _round_up(x, m):
    return (x + m - 1) // m * m


def _vmem_capacity_bytes():
    try:
        return int(pltpu.get_tpu_info().vmem_capacity_bytes)
    except Exception:
        return 64 * 1024 * 1024                      # v7x-safe fallback


def _choose_batch_tile(N, c_local, c_global, W, in_itemsize, vmem_capacity):
    """Largest multiple-of-8 batch tile whose double-buffered blocks fit in ~40%
    of VMEM, capped so the grid keeps >= 2 steps (v7x megacore) when N allows."""
    w_pad = _round_up(W, 128)                        # lane padding of VMEM tiles
    cg_pad = _round_up(c_global, 128)
    c_pad = _round_up(c_local, 8)                    # sublane padding
    bytes_per_row = 2 * (c_pad * w_pad * in_itemsize   # x block  (double-buffered)
                         + cg_pad * in_itemsize        # g block
                         + w_pad * 4)                  # out block (f32)
    bn = int(vmem_capacity * 0.4) // max(bytes_per_row, 1)
    bn = min(bn, 2048)                               # per-step DMA already >> step overhead
    if N > 8:                                        # keep >= 2 grid steps for v7x's 2 TCs
        bn = min(bn, _round_up((N + 1) // 2, 8))
    bn = max((bn // 8) * 8, 8)
    return N if bn >= N else bn


def local_disc_eegnet(localf, globalf, conv_w, conv_b, *, batch_tile=None):
    """localf: (N, nfeatl, 1, nfeatl2), globalf: (N, nfeatg),
    conv_w: (1, nfeatl+nfeatg, 1, 1), conv_b: (1,)  ->  (N, nfeatl2) f32."""
    N, c_local, H, W = localf.shape
    assert H == 1, "torch.cat in the module requires localf height == 1"
    c_global = globalf.shape[1]
    assert conv_w.shape == (1, c_local + c_global, 1, 1)

    # concat order in the module is (localf, globalff) along channels.
    w = conv_w.reshape(c_local + c_global).astype(jnp.float32)
    wl = w[:c_local].reshape(1, c_local, 1)          # weights hitting local channels
    wg = w[c_local:].reshape(1, c_global)            # weights hitting global channels
    b = conv_b.reshape(1).astype(jnp.float32)

    # Native dtype straight into the kernel: no wrapper-side cast (which would
    # write a full-size extra copy to HBM before the kernel reads it).
    x = localf.reshape(N, c_local, W)                # drop the size-1 H dim (free view)
    g = globalf

    vmem_cap = _vmem_capacity_bytes()
    in_itemsize = jnp.dtype(x.dtype).itemsize
    if batch_tile is None:
        bn = _choose_batch_tile(N, c_local, c_global, W, in_itemsize, vmem_cap)
    else:
        bn = min(int(batch_tile), N)
        if bn < N and bn % 8 != 0:                   # (8,128) sublane rule for tiled dims
            bn = min(_round_up(max(bn, 1), 8), N)
    grid = (pl.cdiv(N, bn),)

    # Per-generation scoped-VMEM limit: ~48 MiB on v7x (64 MiB), ~96 MiB on v5e/v6e.
    vmem_limit = int(min(vmem_cap * 3 // 4, 100 * 1024 * 1024))

    out = pl.pallas_call(
        _kernel,
        out_shape=jax.ShapeDtypeStruct((N, W), jnp.float32),
        grid=grid,
        in_specs=[
            pl.BlockSpec(memory_space=pltpu.MemorySpace.VMEM),    # wl (1, c_local, 1)
            pl.BlockSpec(memory_space=pltpu.MemorySpace.VMEM),    # wg (1, c_global)
            pl.BlockSpec(memory_space=pltpu.MemorySpace.SMEM),    # bias (1,)
            pl.BlockSpec((bn, c_local, W), lambda i: (i, 0, 0)),  # local features
            pl.BlockSpec((bn, c_global), lambda i: (i, 0)),       # global features
        ],
        out_specs=pl.BlockSpec((bn, W), lambda i: (i, 0)),
        compiler_params=pltpu.CompilerParams(
            dimension_semantics=("parallel",),       # megacore-splittable batch axis
            vmem_limit_bytes=vmem_limit,
        ),
    )(wl, wg, b, x, g)

    return out  # already the flattened module output (N, nfeatl2)


def reference(localf, globalf, conv_w, conv_b):
    """Pure-JAX mirror of the torch forward (eval mode, Dropout = identity)."""
    N = localf.shape[0]
    nfeatl2 = localf.shape[3]
    globalff = jnp.tile(globalf[:, :, None, None], (1, 1, 1, nfeatl2))
    concat = jnp.concatenate([localf, globalff], axis=1)
    out = jax.lax.conv_general_dilated(
        concat, conv_w, window_strides=(1, 1), padding="VALID",
        dimension_numbers=("NCHW", "OIHW", "NCHW"))
    out = out + conv_b[None, :, None, None]
    return out.reshape(N, -1)


if __name__ == "__main__":
    key = jax.random.PRNGKey(0)
    k1, k2, k3, k4 = jax.random.split(key, 4)

    # Small shapes consistent with the module's forward.
    N, nfeatl, nfeatg, nfeatl2 = 2, 4, 8, 16
    localf = jax.random.normal(k1, (N, nfeatl, 1, nfeatl2), jnp.float32)
    globalf = jax.random.normal(k2, (N, nfeatg), jnp.float32)
    conv_w = jax.random.normal(k3, (1, nfeatl + nfeatg, 1, 1), jnp.float32) * 0.1
    conv_b = jax.random.normal(k4, (1,), jnp.float32) * 0.1

    out = jax.block_until_ready(local_disc_eegnet(localf, globalf, conv_w, conv_b))
    ref = reference(localf, globalf, conv_w, conv_b)
    assert out.shape == ref.shape, (out.shape, ref.shape)
    if not bool(jnp.allclose(out, ref, atol=1e-5, rtol=1e-5)):
        raise AssertionError("Pallas kernel output does not match reference")

    # Multi-step grid + partial final block (N not divisible by the batch tile).
    N2 = 20
    localf2 = jax.random.normal(k1, (N2, nfeatl, 1, nfeatl2), jnp.float32)
    globalf2 = jax.random.normal(k2, (N2, nfeatg), jnp.float32)
    out2 = jax.block_until_ready(
        local_disc_eegnet(localf2, globalf2, conv_w, conv_b, batch_tile=8))
    ref2 = reference(localf2, globalf2, conv_w, conv_b)
    if not bool(jnp.allclose(out2, ref2, atol=1e-5, rtol=1e-5)):
        raise AssertionError("Pallas kernel output mismatch on partial-tile case")

    print("KERNEL_OK")
</pallas_src>

<mosaic_0001>
module attributes {stable_mosaic.version = 11 : i64} {
  func.func @_kernel(%arg0: i32, %arg1: memref<1x4x1xf32, #tpu.memory_space<vmem>>, %arg2: memref<1x8xf32, #tpu.memory_space<vmem>>, %arg3: memref<1xf32, #tpu.memory_space<smem>>, %arg4: memref<2x4x16xf32, #tpu.memory_space<vmem>>, %arg5: memref<2x8xf32, #tpu.memory_space<vmem>>, %arg6: memref<2x16xf32, #tpu.memory_space<vmem>>) attributes {dimension_semantics = [#tpu.dimension_semantics<parallel>], iteration_bounds = array<i64: 1>, scalar_prefetch = 0 : i64, scratch_operands = 0 : i64, tpu.core_type = #tpu.core_type<tc>, window_params = [{pipeline_mode = #tpu.pipeline_mode<synchronous>, transform_indices = @transform_0, window_bounds = array<i64: 1, 4, 1>}, {pipeline_mode = #tpu.pipeline_mode<synchronous>, transform_indices = @transform_1, window_bounds = array<i64: 1, 8>}, {transform_indices = @transform_2, window_bounds = array<i64: 1>}, {transform_indices = @transform_3, window_bounds = array<i64: 2, 4, 16>}, {transform_indices = @transform_4, window_bounds = array<i64: 2, 8>}, {transform_indices = @transform_5, window_bounds = array<i64: 2, 16>}]} {
    %c0 = arith.constant 0 : index
    %c0_0 = arith.constant 0 : index
    %c0_1 = arith.constant 0 : index
    %0 = vector.load %arg4[%c0, %c0_0, %c0_1] : memref<2x4x16xf32, #tpu.memory_space<vmem>>, vector<2x4x16xf32>
    %c0_2 = arith.constant 0 : index
    %c0_3 = arith.constant 0 : index
    %c0_4 = arith.constant 0 : index
    %1 = vector.load %arg1[%c0_2, %c0_3, %c0_4] : memref<1x4x1xf32, #tpu.memory_space<vmem>>, vector<1x4x1xf32>
    %2 = vector.broadcast %1 : vector<1x4x1xf32> to vector<2x4x16xf32>
    %3 = arith.mulf %0, %2 : vector<2x4x16xf32>
    %cst = arith.constant dense<0.000000e+00> : vector<2x16xf32>
    %4 = vector.multi_reduction <add>, %3, %cst [1] : vector<2x4x16xf32> to vector<2x16xf32>
    %c0_5 = arith.constant 0 : index
    %c0_6 = arith.constant 0 : index
    %5 = vector.load %arg5[%c0_5, %c0_6] : memref<2x8xf32, #tpu.memory_space<vmem>>, vector<2x8xf32>
    %c0_7 = arith.constant 0 : index
    %c0_8 = arith.constant 0 : index
    %6 = vector.load %arg2[%c0_7, %c0_8] : memref<1x8xf32, #tpu.memory_space<vmem>>, vector<1x8xf32>
    %7 = vector.broadcast %6 : vector<1x8xf32> to vector<2x8xf32>
    %8 = arith.mulf %5, %7 : vector<2x8xf32>
    %cst_9 = arith.constant dense<0.000000e+00> : vector<2xf32>
    %9 = vector.multi_reduction <add>, %8, %cst_9 [1] : vector<2x8xf32> to vector<2xf32>
    %10 = vector.shape_cast %9 : vector<2xf32> to vector<2x1xf32>
    %c0_10 = arith.constant 0 : index
    %11 = memref.load %arg3[%c0_10] : memref<1xf32, #tpu.memory_space<smem>>
    %12 = vector.broadcast %11 : f32 to vector<2x1xf32>
    %13 = arith.addf %10, %12 : vector<2x1xf32>
    %14 = vector.broadcast %13 : vector<2x1xf32> to vector<2x16xf32>
    %15 = arith.addf %4, %14 : vector<2x16xf32>
    %c0_11 = arith.constant 0 : index
    %c0_12 = arith.constant 0 : index
    %16 = vector.load %arg6[%c0_11, %c0_12] : memref<2x16xf32, #tpu.memory_space<vmem>>, vector<2x16xf32>
    tpu.vector_store %arg6[%c0_11, %c0_12], %15 {strides = array<i32>} : memref<2x16xf32, #tpu.memory_space<vmem>>, vector<2x16xf32>,
    return
  }
  func.func @transform_0(%arg0: i32) -> (i32, i32, i32) {
    %c0_i32 = arith.constant 0 : i32
    %c0_i32_0 = arith.constant 0 : i32
    %c0_i32_1 = arith.constant 0 : i32
    %c0_i32_2 = arith.constant 0 : i32
    return %c0_i32, %c0_i32_0, %c0_i32_1 : i32, i32, i32
  }
  func.func @transform_1(%arg0: i32) -> (i32, i32) {
    %c0_i32 = arith.constant 0 : i32
    %c0_i32_0 = arith.constant 0 : i32
    %c0_i32_1 = arith.constant 0 : i32
    return %c0_i32, %c0_i32_0 : i32, i32
  }
  func.func @transform_2(%arg0: i32) -> i32 {
    %c0_i32 = arith.constant 0 : i32
    %c0_i32_0 = arith.constant 0 : i32
    return %c0_i32 : i32
  }
  func.func @transform_3(%arg0: i32) -> (i32, i32, i32) {
    %c0_i32 = arith.constant 0 : i32
    %c0_i32_0 = arith.constant 0 : i32
    %c0_i32_1 = arith.constant 0 : i32
    return %arg0, %c0_i32, %c0_i32_0 : i32, i32, i32
  }
  func.func @transform_4(%arg0: i32) -> (i32, i32) {
    %c0_i32 = arith.constant 0 : i32
    %c0_i32_0 = arith.constant 0 : i32
    return %arg0, %c0_i32 : i32, i32
  }
  func.func @transform_5(%arg0: i32) -> (i32, i32) {
    %c0_i32 = arith.constant 0 : i32
    %c0_i32_0 = arith.constant 0 : i32
    return %arg0, %c0_i32 : i32, i32
  }
}

</mosaic_0001>

<llo_original>
// kernel: tpu_custom_call.1
$region0: #{tpu_custom_call.1}
  #allocation0 [shape = 'u32[]', space=smem, size = 0x4, offset = 0x4, fixed_abs, tag = 'smem constant byte address 0x4 - core index']
  #allocation1 [shape = 'u32[144,128]{1,0:T(1,128)}', space=vmem, size = 0x12000, scoped, tag = 'internal scratch']
  #allocation2 [shape = 'f32[1]{0:T(128)S(6)}', space=smem, size = 0x200, scoped, tag = 'scoped memory for tpu_custom_call.1']
  %s0 = inlined_call_operand.vmem [shape: f32[1,4,1], index: 0, kind: input, shape index: {}]
  %s1 = inlined_call_operand.vmem [shape: f32[1,8], index: 1, kind: input, shape index: {}]
  %s2 = inlined_call_operand.<no memory space> [shape: f32[1], index: 2, kind: input, shape index: {}]
  %s3 = inlined_call_operand.vmem [shape: f32[2,4,16], index: 3, kind: input, shape index: {}]
  %s4 = inlined_call_operand.vmem [shape: f32[2,8], index: 4, kind: input, shape index: {}]
  %s5 = inlined_call_operand.hbm [shape: f32[2,16], index: 5, kind: output, shape index: {}]
  %s6 = sld [smem:[#allocation0]]
  $region30: #{tpu_custom_call.1} parent=0
    _
  %s8 = ssub.s32 1, %s6
  %s9 = scalar_select 0, %s8, %s6
  %10 = sst [smem:[#allocation2]] %s2
  $region1: #{tpu_custom_call.1} parent=0
    #allocation3 [shape = 'u8[1024]{0}', space=vmem, size = 0x400, scoped, tag = 'output window, operand 0, single buffered']
    #allocation4 [shape = 's32[1]{0}', space=sflag, size = 0x4, scoped, tag = 'scoped memory for tpu_custom_call.1']
    %11 = vsyncpa [#allocation4], 0
    // Predicated region
    $region2: #{tpu_custom_call.1} parent=1 // pred_check
      _
    $region3: #{tpu_custom_call.1} parent=1 // pred_check_branch
      %13 = sbr.rel (0) target = $region5
    $region4: #{tpu_custom_call.1} parent=1 // pred_region
      _
    $region5: #{tpu_custom_call.1} parent=1 // pred_fallthru
      _
    // Predicated region
    $region6: #{tpu_custom_call.1} parent=1 // pred_check
      _
    $region7: #{tpu_custom_call.1} parent=1 // pred_check_branch
      %15 = sbr.rel (0) target = $region9
    $region8: #{tpu_custom_call.1} parent=1 // pred_region
      _
    $region9: #{tpu_custom_call.1} parent=1 // pred_fallthru
      _
    // Predicated region
    $region10: #{tpu_custom_call.1} parent=1 // pred_check
      _
    $region11: #{tpu_custom_call.1} parent=1 // pred_check_branch
      %17 = sbr.rel (0) target = $region13
    $region12: #{tpu_custom_call.1} parent=1 // pred_region
      _
    $region13: #{tpu_custom_call.1} parent=1 // pred_fallthru
      _
    // Predicated region
    $region14: #{tpu_custom_call.1} parent=1 // pred_check
      _
    $region15: #{tpu_custom_call.1} parent=1 // pred_check_branch
      %19 = sbr.rel (0) target = $region17
    $region16: #{tpu_custom_call.1} parent=1 // pred_region
      _
    $region17: #{tpu_custom_call.1} parent=1 // pred_fallthru
      _
    // Predicated region
    $region18: #{tpu_custom_call.1} parent=1 // pred_check
      _
    $region19: #{tpu_custom_call.1} parent=1 // pred_check_branch
      %21 = sbr.rel (0) target = $region21
    $region20: #{tpu_custom_call.1} parent=1 // pred_region
      _
    $region21: #{tpu_custom_call.1} parent=1 // pred_fallthru
      _
    %v22 = vld [vmem:[%s3] sm:$0xf]
    %v23 = vld [vmem:[%s3 + $0x4] sm:$0xf]
    %v24 = vld [vmem:[%s0] sm:$0xf]
    %26 = vset.pattern.permute.xlu0 0
    %27 = vperm.xlu0 %26, %v24
    %v28 = vpop.permute.xlu0 %27
    %v30 = vmul.f32 %v22, %v28
    %v31 = vmul.f32 %v23, %v28
    %vm32 = vcmask 125952
    %v33 = vsel %vm32, %v30, 0.0
    %v34 = vrot.slane %v33, 4
    %v35 = vadd.f32 %v33, %v34
    %v36 = vrot.slane %v35, 2
    %v37 = vadd.f32 %v35, %v36
    %v38 = vrot.slane %v37, 1
    %v39 = vadd.f32 %v37, %v38
    %v40 = vsel %vm32, %v31, 0.0
    %v41 = vrot.slane %v40, 4
    %v42 = vadd.f32 %v40, %v41
    %v43 = vrot.slane %v42, 2
    %v44 = vadd.f32 %v42, %v43
    %v45 = vrot.slane %v44, 1
    %v46 = vadd.f32 %v44, %v45
    %v47 = vld [vmem:[%s4] sm:$0x3]
    %v48 = vld [vmem:[%s1] sm:$0x1]
    %v50 = vlaneseq
    %v51 = vshrl.u32 %v50, 7
    %v52 = vsub.s32 0, %v51
    %v53 = vrot.slane %v48, %v52
    %v55 = vmul.f32 %v47, %v53
    %vm56 = vcmask 58368
    %v57 = vsel %vm56, %v55, 0.0
    %58 = vadd.xlane.f32.xlu0 %v57
    %v59 = vpop.xlane.xlu0 %58
    %s60 = sld [smem:[#allocation2]]
    %v61 = vstv %s60
    %v62 = vadd.f32 %v59, %v61
    %v64 = vrot.slane %v62, 1
    %v67 = vadd.f32 %v39, %v62
    %v68 = vadd.f32 %v46, %v64
    %v71 = vrot.slane %v68, 7
    %vm72 = vcmask 1041409
    %v73 = vsel %vm72, %v71, %v67
    %vm75 = vcmask 123904
    %76 = vst.msk [vmem:[#allocation3] sm:$0x3] %vm75, %v73
    // Predicated region
    $region22: #{tpu_custom_call.1} parent=1 // pred_check
      _
    $region23: #{tpu_custom_call.1} parent=1 // pred_check_branch
      %78 = sbr.rel (0) target = $region25
    $region24: #{tpu_custom_call.1} parent=1 // pred_region
      %s80 = ssub.s32 32, 32
      %81 = vsyncadd [#allocation4], %s80
      %s83 = sshll.u32 [#allocation3], 4
      %s84 = int_to_ptr.vmem [resolvable:$true] %s83
      %86 = dma.vmem_to_hbm [thread:$0]  %s84, 32, %s5, [#allocation4]
    $region25: #{tpu_custom_call.1} parent=1 // pred_fallthru
      _
    // Predicated region
    $region26: #{tpu_custom_call.1} parent=1 // pred_check
      _
    $region27: #{tpu_custom_call.1} parent=1 // pred_check_branch
      %88 = sbr.rel (0) target = $region29
    $region28: #{tpu_custom_call.1} parent=1 // pred_region
      %89 = dma.done [#allocation4], 32
    $region29: #{tpu_custom_call.1} parent=1 // pred_fallthru
      _
    %90 = vsyncpa [#allocation4], 1

</llo_original>
